<compile_context>
chip_gen: v7x
topology: tpu7x:2x2x1
jax: 0.10.0
libtpu: 0.0.40
codegen_flags: <defaults>
</compile_context>

<pallas_src>
import functools
import math

import jax
import jax.numpy as jnp
import numpy as np
from jax import lax
from jax.experimental import pallas as pl
from jax.experimental.pallas import tpu as pltpu


# ---------------------------------------------------------------------------
# Kernels
# ---------------------------------------------------------------------------


def _embed_vmem_kernel(seq_len, use_pe, ids_ref, tok_ref, *rest):
    """Fast path: token table fully resident in VMEM.

    ids_ref    : (B*S,)  int32 SMEM (scalar-prefetched token ids, flattened)
    tok_ref    : (V, D)  VMEM tile of the whole table (constant block index)
    pos_ref    : (tS, D) f32 VMEM tile of the sinusoidal PE (only if use_pe)
    out_ref    : (tS, D) output tile (leading batch dim squeezed)
    gather_buf : (tS, D) VMEM scratch in the table's native dtype
    """
    if use_pe:
        pos_ref, out_ref, gather_buf = rest
    else:
        pos_ref = None
        out_ref, gather_buf = rest

    s = pl.program_id(0)
    b = pl.program_id(1)
    tS = gather_buf.shape[0]
    base = b * seq_len + s * tS

    unroll = 8 if tS % 8 == 0 else 1

    def gather_row(i, carry):
        tok_id = ids_ref[base + i]
        # Dynamic sublane-indexed VMEM row load -> VMEM row store (no DMA).
        gather_buf[pl.ds(i, 1), :] = tok_ref[pl.ds(tok_id, 1), :]
        return carry

    lax.fori_loop(0, tS, gather_row, 0, unroll=unroll)

    rows = gather_buf[...]
    if use_pe:
        # Upcast to f32 in-kernel (free VPU work; required on v5e for bf16).
        out_ref[...] = (rows.astype(jnp.float32) + pos_ref[...]).astype(out_ref.dtype)
    else:
        out_ref[...] = rows.astype(out_ref.dtype)


def _embed_hbm_kernel(seq_len, use_pe, ids_ref, tok_hbm, *rest):
    """Fallback path: token table stays in HBM, per-row DMA gather.

    tok_hbm    : (V, D) raw HBM ref (memory_space=pl.ANY)
    gather_buf : (tS, D) VMEM scratch (gather destination, native dtype)
    sem        : single shared DMA semaphore
    """
    if use_pe:
        pos_ref, out_ref, gather_buf, sem = rest
    else:
        pos_ref = None
        out_ref, gather_buf, sem = rest

    s = pl.program_id(0)
    b = pl.program_id(1)
    tS = gather_buf.shape[0]
    base = b * seq_len + s * tS

    unroll = 8 if tS % 8 == 0 else 1

    # Issue one (1, D) row DMA per token; all copies signal the same semaphore.
    def issue_row(i, carry):
        tok_id = ids_ref[base + i]
        pltpu.make_async_copy(
            tok_hbm.at[pl.ds(tok_id, 1)],
            gather_buf.at[pl.ds(i, 1)],
            sem,
        ).start()
        return carry

    lax.fori_loop(0, tS, issue_row, 0, unroll=unroll)

    # Wait for every row copy. The wait only consumes (dst, sem); the dst slice
    # here matches exactly the destination of the copy started for row i and
    # all rows are the same size, so starts and waits balance on the shared
    # semaphore. (The static src slice is only used for shape.)
    def wait_row(i, carry):
        pltpu.make_async_copy(
            tok_hbm.at[pl.ds(0, 1)],
            gather_buf.at[pl.ds(i, 1)],
            sem,
        ).wait()
        return carry

    lax.fori_loop(0, tS, wait_row, 0, unroll=unroll)
    # TODO(synk): cross-grid-step double buffering of the gather (prefetch the
    # next tile's rows before waiting on this one) -- needs care with
    # "parallel" megacore sharding, so it is left out here.

    rows = gather_buf[...]
    if use_pe:
        out_ref[...] = (rows.astype(jnp.float32) + pos_ref[...]).astype(out_ref.dtype)
    else:
        out_ref[...] = rows.astype(out_ref.dtype)


# ---------------------------------------------------------------------------
# Host-side helpers
# ---------------------------------------------------------------------------


def make_sinusoidal_pe(max_seq_len: int, embedding_dim: int) -> jnp.ndarray:
    """Mirrors CodeEmbedding._create_sinusoidal_positional_embedding."""
    position = jnp.arange(0, max_seq_len, dtype=jnp.float32)[:, None]
    div_term = jnp.exp(
        jnp.arange(0, embedding_dim, 2, dtype=jnp.float32)
        * -(math.log(10000.0) / embedding_dim)
    )
    pe = jnp.zeros((max_seq_len, embedding_dim), dtype=jnp.float32)
    pe = pe.at[:, 0::2].set(jnp.sin(position * div_term))
    pe = pe.at[:, 1::2].set(jnp.cos(position * div_term))
    return pe


def _vmem_capacity_bytes() -> int:
    try:
        return int(pltpu.get_tpu_info().vmem_capacity_bytes)
    except Exception:
        return 64 << 20  # conservative (v7x-sized) fallback


def _pick_seq_tile(seq_len: int, batch: int, bytes_per_row: int) -> int:
    """Largest tile dividing S (multiple of 8), VMEM-budgeted, keeping >= 2
    grid steps when possible so v7x megacore has work on both cores."""
    tile_budget = 12 << 20
    fits = [t for t in (1024, 512, 256, 128, 64, 32, 16, 8)
            if seq_len % t == 0 and t * bytes_per_row <= tile_budget]
    for t in fits:
        if batch * (seq_len // t) >= 2:
            return t
    if fits:
        return fits[0]
    return seq_len  # full-dim block is always legal


def code_embedding_forward(input_ids: jnp.ndarray,
                           token_table: jnp.ndarray,
                           pe: jnp.ndarray = None,
                           use_positional_embedding: bool = True,
                           force_hbm_gather: bool = False) -> jnp.ndarray:
    """Eval-mode forward pass of CodeEmbedding.

    input_ids   : (B, S) integer token ids
    token_table : (V, D) embedding table (native dtype; upcast happens in-kernel)
    pe          : (max_seq_len, D) f32 sinusoidal positional embeddings
    returns     : (B, S, D)
    """
    B, S = input_ids.shape
    V, D = token_table.shape
    max_seq_len = pe.shape[0] if pe is not None else S

    # Truncate like the PyTorch module.
    if S > max_seq_len:
        input_ids = input_ids[:, :max_seq_len]
        S = max_seq_len

    # Clamp ids so an out-of-range id cannot trigger an OOB gather.
    # (PyTorch would raise; here we fail safe.)
    ids_flat = jnp.clip(input_ids.astype(jnp.int32), 0, V - 1).reshape(-1)
    # TODO(synk): for very large B*S, chunk the ids scalar-prefetch (a 1-D SMEM
    # array pads to next_pow2(4*B*S) bytes) instead of one flat array.

    tab_itemsize = jnp.dtype(token_table.dtype).itemsize
    out_dtype = (jnp.result_type(token_table.dtype, jnp.float32)
                 if use_positional_embedding else jnp.dtype(token_table.dtype))
    out_itemsize = jnp.dtype(out_dtype).itemsize

    # Rough per-sequence-row working set: gather scratch + 2x out + 2x pos.
    bytes_per_row = D * (tab_itemsize + 2 * out_itemsize
                         + (2 * 4 if use_positional_embedding else 0))
    tS = _pick_seq_tile(S, B, bytes_per_row)
    grid = (S // tS, B)  # batch innermost -> PE block index constant per step

    table_bytes = V * D * tab_itemsize
    tile_bytes = tS * bytes_per_row
    # 2x table: be conservative about the pipeline double-buffering the
    # (constant-index) full-table block.
    needed_resident = 2 * table_bytes + tile_bytes + (2 << 20)
    cap = _vmem_capacity_bytes()
    use_vmem_table = (not force_hbm_gather) and needed_resident <= int(cap * 0.8)

    if use_vmem_table:
        kernel = functools.partial(_embed_vmem_kernel, S, use_positional_embedding)
        table_spec = pl.BlockSpec((V, D), lambda s, b, ids: (0, 0))
        scratch = [pltpu.VMEM((tS, D), token_table.dtype)]
        vmem_limit = int(min(cap * 0.9, max(needed_resident, 32 << 20)))
    else:
        kernel = functools.partial(_embed_hbm_kernel, S, use_positional_embedding)
        table_spec = pl.BlockSpec(memory_space=pl.ANY)      # table stays in HBM
        scratch = [pltpu.VMEM((tS, D), token_table.dtype),
                   pltpu.SemaphoreType.DMA]
        vmem_limit = int(min(cap * 0.9, max(tile_bytes + (4 << 20), 32 << 20)))

    in_specs = [table_spec]
    inputs = [ids_flat, token_table]
    if use_positional_embedding:
        in_specs.append(pl.BlockSpec((tS, D), lambda s, b, ids: (s, 0)))
        inputs.append(pe[:S].astype(jnp.float32))

    # TODO(synk): if D is not a multiple of 128, pad D in the wrapper so the
    # output store stays a full-lane vst (matters most on v5e).
    out = pl.pallas_call(
        kernel,
        out_shape=jax.ShapeDtypeStruct((B, S, D), out_dtype),
        grid_spec=pltpu.PrefetchScalarGridSpec(
            num_scalar_prefetch=1,                  # ids -> SMEM
            grid=grid,
            in_specs=in_specs,
            out_specs=pl.BlockSpec((pl.Squeezed(), tS, D),
                                   lambda s, b, ids: (b, s, 0)),
            scratch_shapes=scratch,
        ),
        compiler_params=pltpu.CompilerParams(
            dimension_semantics=("parallel", "parallel"),
            vmem_limit_bytes=vmem_limit,
        ),
    )(*inputs)

    # Dropout in eval mode is identity.
    # TODO(synk): training-mode dropout (pltpu.prng_random_bits mask), custom
    # position_ids, and the dynamically-created `expected_dim` Linear adapter
    # are not modeled here.
    return out


# ---------------------------------------------------------------------------
# Demo / correctness check
# ---------------------------------------------------------------------------

if __name__ == "__main__":
    vocab_size = 64
    embedding_dim = 128          # lane-dense output (multiple of 128)
    max_seq_len = 16
    batch = 2
    seq_len = 8

    key = jax.random.PRNGKey(0)
    k_ids, k_emb = jax.random.split(key)

    input_ids = jax.random.randint(k_ids, (batch, seq_len), 0, vocab_size,
                                   dtype=jnp.int32)
    # nn.Embedding default init: N(0, 1)
    token_table = jax.random.normal(k_emb, (vocab_size, embedding_dim),
                                    dtype=jnp.float32)
    pe = make_sinusoidal_pe(max_seq_len, embedding_dim)

    ref = token_table[input_ids] + pe[:seq_len][None, :, :]
    ref_nope = token_table[input_ids]

    # Fast path: table resident in VMEM, in-kernel row gather.
    out = jax.block_until_ready(code_embedding_forward(input_ids, token_table, pe))
    np.testing.assert_allclose(np.asarray(out), np.asarray(ref),
                               rtol=1e-6, atol=1e-6)
    assert out.shape == (batch, seq_len, embedding_dim)

    # Fallback path (forced for coverage): table stays in HBM, DMA row gather.
    out_hbm = jax.block_until_ready(
        code_embedding_forward(input_ids, token_table, pe, force_hbm_gather=True))
    np.testing.assert_allclose(np.asarray(out_hbm), np.asarray(ref),
                               rtol=1e-6, atol=1e-6)

    # Specialized no-positional-embedding variant.
    out_nope = jax.block_until_ready(
        code_embedding_forward(input_ids, token_table, pe,
                               use_positional_embedding=False))
    np.testing.assert_allclose(np.asarray(out_nope), np.asarray(ref_nope),
                               rtol=1e-6, atol=1e-6)

    print("KERNEL_OK")
</pallas_src>

<mosaic_0001>
module attributes {stable_mosaic.version = 11 : i64} {
  func.func @_embed_vmem_kernel(%arg0: i32, %arg1: i32, %arg2: memref<16xi32, #tpu.memory_space<smem>>, %arg3: memref<64x128xf32, #tpu.memory_space<vmem>>, %arg4: memref<8x128xf32, #tpu.memory_space<vmem>>, %arg5: memref<1x8x128xf32, #tpu.memory_space<vmem>>, %arg6: memref<8x128xf32, #tpu.memory_space<vmem>>) attributes {dimension_semantics = [#tpu.dimension_semantics<parallel>, #tpu.dimension_semantics<parallel>], iteration_bounds = array<i64: 1, 2>, scalar_prefetch = 1 : i64, scratch_operands = 1 : i64, tpu.core_type = #tpu.core_type<tc>, window_params = [{pipeline_mode = #tpu.pipeline_mode<synchronous>, transform_indices = @transform_0, window_bounds = array<i64: 64, 128>}, {transform_indices = @transform_1, window_bounds = array<i64: 8, 128>}, {transform_indices = @transform_2, window_bounds = array<i64: 1, 8, 128>}]} {
    %c8_i32 = arith.constant 8 : i32
    %0 = arith.muli %arg1, %c8_i32 : i32
    %c8_i32_0 = arith.constant 8 : i32
    %1 = arith.muli %arg0, %c8_i32_0 : i32
    %2 = arith.addi %0, %1 : i32
    %c0_i32 = arith.constant 0 : i32
    %3 = arith.addi %2, %c0_i32 : i32
    %4 = arith.index_cast %3 : i32 to index
    %5 = memref.load %arg2[%4] : memref<16xi32, #tpu.memory_space<smem>>
    %6 = arith.index_cast %5 : i32 to index
    %c0 = arith.constant 0 : index
    %7 = vector.load %arg3[%6, %c0] : memref<64x128xf32, #tpu.memory_space<vmem>>, vector<1x128xf32>
    %8 = arith.index_cast %c0_i32 : i32 to index
    %c0_1 = arith.constant 0 : index
    %9 = vector.load %arg6[%8, %c0_1] : memref<8x128xf32, #tpu.memory_space<vmem>>, vector<1x128xf32>
    tpu.vector_store %arg6[%8, %c0_1], %7 {strides = array<i32>} : memref<8x128xf32, #tpu.memory_space<vmem>>, vector<1x128xf32>,
    %c1_i32 = arith.constant 1 : i32
    %10 = arith.addi %2, %c1_i32 : i32
    %11 = arith.index_cast %10 : i32 to index
    %12 = memref.load %arg2[%11] : memref<16xi32, #tpu.memory_space<smem>>
    %13 = arith.index_cast %12 : i32 to index
    %c0_2 = arith.constant 0 : index
    %14 = vector.load %arg3[%13, %c0_2] : memref<64x128xf32, #tpu.memory_space<vmem>>, vector<1x128xf32>
    %15 = arith.index_cast %c1_i32 : i32 to index
    %c0_3 = arith.constant 0 : index
    %16 = vector.load %arg6[%15, %c0_3] : memref<8x128xf32, #tpu.memory_space<vmem>>, vector<1x128xf32>
    tpu.vector_store %arg6[%15, %c0_3], %14 {strides = array<i32>} : memref<8x128xf32, #tpu.memory_space<vmem>>, vector<1x128xf32>,
    %c2_i32 = arith.constant 2 : i32
    %17 = arith.addi %2, %c2_i32 : i32
    %18 = arith.index_cast %17 : i32 to index
    %19 = memref.load %arg2[%18] : memref<16xi32, #tpu.memory_space<smem>>
    %20 = arith.index_cast %19 : i32 to index
    %c0_4 = arith.constant 0 : index
    %21 = vector.load %arg3[%20, %c0_4] : memref<64x128xf32, #tpu.memory_space<vmem>>, vector<1x128xf32>
    %22 = arith.index_cast %c2_i32 : i32 to index
    %c0_5 = arith.constant 0 : index
    %23 = vector.load %arg6[%22, %c0_5] : memref<8x128xf32, #tpu.memory_space<vmem>>, vector<1x128xf32>
    tpu.vector_store %arg6[%22, %c0_5], %21 {strides = array<i32>} : memref<8x128xf32, #tpu.memory_space<vmem>>, vector<1x128xf32>,
    %c3_i32 = arith.constant 3 : i32
    %24 = arith.addi %2, %c3_i32 : i32
    %25 = arith.index_cast %24 : i32 to index
    %26 = memref.load %arg2[%25] : memref<16xi32, #tpu.memory_space<smem>>
    %27 = arith.index_cast %26 : i32 to index
    %c0_6 = arith.constant 0 : index
    %28 = vector.load %arg3[%27, %c0_6] : memref<64x128xf32, #tpu.memory_space<vmem>>, vector<1x128xf32>
    %29 = arith.index_cast %c3_i32 : i32 to index
    %c0_7 = arith.constant 0 : index
    %30 = vector.load %arg6[%29, %c0_7] : memref<8x128xf32, #tpu.memory_space<vmem>>, vector<1x128xf32>
    tpu.vector_store %arg6[%29, %c0_7], %28 {strides = array<i32>} : memref<8x128xf32, #tpu.memory_space<vmem>>, vector<1x128xf32>,
    %c4_i32 = arith.constant 4 : i32
    %31 = arith.addi %2, %c4_i32 : i32
    %32 = arith.index_cast %31 : i32 to index
    %33 = memref.load %arg2[%32] : memref<16xi32, #tpu.memory_space<smem>>
    %34 = arith.index_cast %33 : i32 to index
    %c0_8 = arith.constant 0 : index
    %35 = vector.load %arg3[%34, %c0_8] : memref<64x128xf32, #tpu.memory_space<vmem>>, vector<1x128xf32>
    %36 = arith.index_cast %c4_i32 : i32 to index
    %c0_9 = arith.constant 0 : index
    %37 = vector.load %arg6[%36, %c0_9] : memref<8x128xf32, #tpu.memory_space<vmem>>, vector<1x128xf32>
    tpu.vector_store %arg6[%36, %c0_9], %35 {strides = array<i32>} : memref<8x128xf32, #tpu.memory_space<vmem>>, vector<1x128xf32>,
    %c5_i32 = arith.constant 5 : i32
    %38 = arith.addi %2, %c5_i32 : i32
    %39 = arith.index_cast %38 : i32 to index
    %40 = memref.load %arg2[%39] : memref<16xi32, #tpu.memory_space<smem>>
    %41 = arith.index_cast %40 : i32 to index
    %c0_10 = arith.constant 0 : index
    %42 = vector.load %arg3[%41, %c0_10] : memref<64x128xf32, #tpu.memory_space<vmem>>, vector<1x128xf32>
    %43 = arith.index_cast %c5_i32 : i32 to index
    %c0_11 = arith.constant 0 : index
    %44 = vector.load %arg6[%43, %c0_11] : memref<8x128xf32, #tpu.memory_space<vmem>>, vector<1x128xf32>
    tpu.vector_store %arg6[%43, %c0_11], %42 {strides = array<i32>} : memref<8x128xf32, #tpu.memory_space<vmem>>, vector<1x128xf32>,
    %c6_i32 = arith.constant 6 : i32
    %45 = arith.addi %2, %c6_i32 : i32
    %46 = arith.index_cast %45 : i32 to index
    %47 = memref.load %arg2[%46] : memref<16xi32, #tpu.memory_space<smem>>
    %48 = arith.index_cast %47 : i32 to index
    %c0_12 = arith.constant 0 : index
    %49 = vector.load %arg3[%48, %c0_12] : memref<64x128xf32, #tpu.memory_space<vmem>>, vector<1x128xf32>
    %50 = arith.index_cast %c6_i32 : i32 to index
    %c0_13 = arith.constant 0 : index
    %51 = vector.load %arg6[%50, %c0_13] : memref<8x128xf32, #tpu.memory_space<vmem>>, vector<1x128xf32>
    tpu.vector_store %arg6[%50, %c0_13], %49 {strides = array<i32>} : memref<8x128xf32, #tpu.memory_space<vmem>>, vector<1x128xf32>,
    %c7_i32 = arith.constant 7 : i32
    %52 = arith.addi %2, %c7_i32 : i32
    %53 = arith.index_cast %52 : i32 to index
    %54 = memref.load %arg2[%53] : memref<16xi32, #tpu.memory_space<smem>>
    %55 = arith.index_cast %54 : i32 to index
    %c0_14 = arith.constant 0 : index
    %56 = vector.load %arg3[%55, %c0_14] : memref<64x128xf32, #tpu.memory_space<vmem>>, vector<1x128xf32>
    %57 = arith.index_cast %c7_i32 : i32 to index
    %c0_15 = arith.constant 0 : index
    %58 = vector.load %arg6[%57, %c0_15] : memref<8x128xf32, #tpu.memory_space<vmem>>, vector<1x128xf32>
    tpu.vector_store %arg6[%57, %c0_15], %56 {strides = array<i32>} : memref<8x128xf32, #tpu.memory_space<vmem>>, vector<1x128xf32>,
    %c8_i32_16 = arith.constant 8 : i32
    %c0_17 = arith.constant 0 : index
    %c0_18 = arith.constant 0 : index
    %59 = vector.load %arg6[%c0_17, %c0_18] : memref<8x128xf32, #tpu.memory_space<vmem>>, vector<8x128xf32>
    %c0_19 = arith.constant 0 : index
    %c0_20 = arith.constant 0 : index
    %60 = vector.load %arg4[%c0_19, %c0_20] : memref<8x128xf32, #tpu.memory_space<vmem>>, vector<8x128xf32>
    %61 = arith.addf %59, %60 : vector<8x128xf32>
    %c0_21 = arith.constant 0 : index
    %c0_22 = arith.constant 0 : index
    %c0_23 = arith.constant 0 : index
    %62 = vector.load %arg5[%c0_21, %c0_22, %c0_23] : memref<1x8x128xf32, #tpu.memory_space<vmem>>, vector<1x8x128xf32>
    %63 = vector.shape_cast %62 : vector<1x8x128xf32> to vector<8x128xf32>
    %64 = vector.shape_cast %61 : vector<8x128xf32> to vector<1x8x128xf32>
    tpu.vector_store %arg5[%c0_21, %c0_22, %c0_23], %64 {strides = array<i32>} : memref<1x8x128xf32, #tpu.memory_space<vmem>>, vector<1x8x128xf32>,
    return
  }
  func.func @transform_0(%arg0: i32, %arg1: i32, %arg2: memref<16xi32, #tpu.memory_space<smem>>) -> (i32, i32) {
    %c0_i32 = arith.constant 0 : i32
    %c0_i32_0 = arith.constant 0 : i32
    %c0_i32_1 = arith.constant 0 : i32
    return %c0_i32, %c0_i32_0 : i32, i32
  }
  func.func @transform_1(%arg0: i32, %arg1: i32, %arg2: memref<16xi32, #tpu.memory_space<smem>>) -> (i32, i32) {
    %c0_i32 = arith.constant 0 : i32
    %c0_i32_0 = arith.constant 0 : i32
    return %arg0, %c0_i32 : i32, i32
  }
  func.func @transform_2(%arg0: i32, %arg1: i32, %arg2: memref<16xi32, #tpu.memory_space<smem>>) -> (i32, i32, i32) {
    %c0_i32 = arith.constant 0 : i32
    %c0_i32_0 = arith.constant 0 : i32
    return %arg1, %arg0, %c0_i32 : i32, i32, i32
  }
}

</mosaic_0001>

<llo_original>
// kernel: tpu_custom_call.1
$region0: #{tpu_custom_call.1}
  #allocation0 [shape = 'u32[]', space=smem, size = 0x4, offset = 0x4, fixed_abs, tag = 'smem constant byte address 0x4 - core index']
  #allocation1 [shape = 'u32[144,128]{1,0:T(1,128)}', space=vmem, size = 0x12000, scoped, tag = 'internal scratch']
  #allocation2 [shape = 'f32[8,128]{1,0:T(8,128)}', space=vmem, size = 0x1000, scoped, tag = 'scratch operand']
  #allocation3 [shape = 's32[1]{0}', space=sflag, size = 0x4, scoped, tag = 'scoped memory for tpu_custom_call.1']
  #allocation4 [shape = 'u8[512]{0}', space=smem, size = 0x200, scoped, tag = 'prefetched SMEM operand 0']
  %s0 = inlined_call_operand.hbm [shape: s32[16], index: 0, kind: input, shape index: {}]
  %s1 = inlined_call_operand.hbm [shape: f32[64,128], index: 1, kind: input, shape index: {}]
  %s2 = inlined_call_operand.hbm [shape: f32[8,128], index: 2, kind: input, shape index: {}]
  %s3 = inlined_call_operand.hbm [shape: f32[2,8,128], index: 3, kind: output, shape index: {}]
  %s4 = sld [smem:[#allocation0]]
  $region49: #{tpu_custom_call.1} parent=0
    _
  %s6 = ssub.s32 1, %s4
  %s7 = scalar_select 0, %s6, %s4
  %9 = dma.hbm_to_smem %s0, 16, [#allocation4], [#allocation3]
  %10 = dma.done [#allocation3], 16
  %11 = sfence
  $region1: #{tpu_custom_call.1} parent=0
    #allocation5 [shape = 'u8[32768]{0}', space=vmem, size = 0x8000, scoped, tag = 'input window, operand 1, single buffered']
    #allocation6 [shape = 's32[2]{0}', space=sflag, size = 0x8, scoped, tag = 'scoped memory for tpu_custom_call.1']
    #allocation7 [shape = 's32[2]{0}', space=sflag, size = 0x8, scoped, tag = 'scoped memory for tpu_custom_call.1']
    #allocation8 [shape = 'u8[4096]{0}', space=vmem, size = 0x1000, scoped, tag = 'input window, operand 2, single buffered']
    #allocation9 [shape = 's32[1]{0}', space=sflag, size = 0x4, scoped, tag = 'scoped memory for tpu_custom_call.1']
    #allocation10 [shape = 'u8[8192]{0}', space=vmem, size = 0x2000, scoped, tag = 'output window, operand 0']
    %12 = vsyncpa [#allocation6], 0
    %13 = vsyncpa [#allocation9], 0
    %14 = vsyncpa [#allocation7], 0
    %s15 = scalar_lea.sflag [#allocation7], 1
    %16 = vsyncpa %s15, 0
    loop: start=0, step=1, limit=4
    $region2: #{tpu_custom_call.1} parent=1 // loop_pre_header
      _
    $region3: #{tpu_custom_call.1} parent=1 // loop_header
      %s18 = sphi 0, %s22
      %p19 = scmp.ge.s32.totalorder %s18, 4
      %s25 = sphi 0, %s37
      %s26 = sphi 0, %s33
      %s27 = sphi 0, %s25
      %s28 = sphi 0, %s26
      %s29 = sphi 0, %s27
      %s30 = sphi 0, %s28
      %s38 = sphi 0, %s38
      %s40 = sphi 0, %s38
      %s41 = sphi 0, %s40
      %s55 = sphi 0, %s41
      %s61 = sphi 0, %s63
      %s64 = sphi 0, %s61
      %s65 = sphi 0, %s64
      %s81 = sphi 0, %s65
      %s89 = sphi 0, %s91
      %s92 = sphi 0, %s89
      %s93 = sphi 0, %s92
      %s109 = sphi 0, %s93
    $region4: #{tpu_custom_call.1} parent=1 // loop_header_branch
      %21 = sbr.rel (%p19) target = $region8
    $region5: #{tpu_custom_call.1} parent=1 // loop_body
      %s23 = ssub.s32 %s18, 1
      %s24 = ssub.s32 %s18, 2
      %s31 = sadd.s32 1, %s26
      %p32 = scmp.ge.s32.totalorder %s31, 2
      %s33 = scalar_select %p32, 0, %s31
      %s34 = sadd.s32 1, %s25
      %s35 = scalar_select %p32, %s34, %s25
      %p36 = scmp.ge.s32.totalorder %s35, 1
      %s37 = scalar_select %p36, 0, %s35
      %s39 = sadd.s32 %s38, 1
      %p42 = scmp.eq.s32.totalorder %s18, 1
      %p43 = scmp.ne.s32.totalorder %s38, %s40
      %p44 = scmp.eq.s32.totalorder %s18, 0
      %p45 = por %p43, %p44
      %p46 = scmp.ne.s32.totalorder %s38, %s40
      %p47 = scmp.eq.s32.totalorder %s23, 1
      %p48 = por %p46, %p47
      %p49 = scmp.ne.s32.totalorder %s40, %s41
      %p50 = scmp.eq.s32.totalorder %s23, 0
      %p51 = por %p49, %p50
      %p52 = scmp.ne.s32.totalorder %s40, %s41
      %p53 = scmp.eq.s32.totalorder %s24, 1
      %p54 = por %p52, %p53
      %p56 = scmp.ne.s32.totalorder %s41, %s55
      %p57 = scmp.eq.s32.totalorder %s24, 0
      %p58 = por %p56, %p57
      %s59 = ssub.s32 %s25, %s37
      %p60 = scmp.eq.s32.totalorder %s59, 0
      %s62 = sadd.s32 %s61, 1
      %s63 = scalar_select %p60, %s61, %s62
      %p66 = pneg %p60
      %p67 = scmp.eq.s32.totalorder %s18, 1
      %p68 = por %p66, %p67
      %p69 = scmp.ne.s32.totalorder %s61, %s64
      %p70 = scmp.eq.s32.totalorder %s18, 0
      %p71 = por %p69, %p70
      %p72 = scmp.ne.s32.totalorder %s61, %s64
      %p73 = scmp.eq.s32.totalorder %s23, 1
      %p74 = por %p72, %p73
      %p75 = scmp.ne.s32.totalorder %s64, %s65
      %p76 = scmp.eq.s32.totalorder %s23, 0
      %p77 = por %p75, %p76
      %p78 = scmp.ne.s32.totalorder %s64, %s65
      %p79 = scmp.eq.s32.totalorder %s24, 1
      %p80 = por %p78, %p79
      %p82 = scmp.ne.s32.totalorder %s65, %s81
      %p83 = scmp.eq.s32.totalorder %s24, 0
      %p84 = por %p82, %p83
      %s85 = ssub.s32 %s26, %s33
      %s86 = ssub.s32 %s25, %s37
      %s87 = sor.u32 %s85, %s86
      %p88 = scmp.eq.s32.totalorder %s87, 0
      %s90 = sadd.s32 %s89, 1
      %s91 = scalar_select %p88, %s89, %s90
      %p94 = pneg %p88
      %p95 = scmp.eq.s32.totalorder %s18, 1
      %p96 = por %p94, %p95
      %p97 = scmp.ne.s32.totalorder %s89, %s92
      %p98 = scmp.eq.s32.totalorder %s18, 0
      %p99 = por %p97, %p98
      %p100 = scmp.ne.s32.totalorder %s89, %s92
      %p101 = scmp.eq.s32.totalorder %s23, 1
      %p102 = por %p100, %p101
      %p103 = scmp.ne.s32.totalorder %s92, %s93
      %p104 = scmp.eq.s32.totalorder %s23, 0
      %p105 = por %p103, %p104
      %p106 = scmp.ne.s32.totalorder %s92, %s93
      %p107 = scmp.eq.s32.totalorder %s24, 1
      %p108 = por %p106, %p107
      %p110 = scmp.ne.s32.totalorder %s93, %s109
      %p111 = scmp.eq.s32.totalorder %s24, 0
      %p112 = por %p110, %p111
      %p113 = scmp.le.s32.totalorder 1, %s18
      %p114 = scmp.lt.s32.totalorder %s18, 3
      %p115 = pnand %p113, %p114
      %p116 = pneg %p115
      // Predicated region
      $region9: #{tpu_custom_call.1} parent=5 // pred_check
        _
      $region10: #{tpu_custom_call.1} parent=5 // pred_check_branch
        %118 = sbr.rel (%p115) target = $region12
      $region11: #{tpu_custom_call.1} parent=5 // pred_region
        %s119 = ssub.s32 %s18, 1
        // Predicated region
        $region13: #{tpu_custom_call.1} parent=11 // pred_check
          %p120 = pneg %p51
        $region14: #{tpu_custom_call.1} parent=11 // pred_check_branch
          %122 = sbr.rel (%p120) target = $region16
        $region15: #{tpu_custom_call.1} parent=11 // pred_region
          %s124 = ssub.s32 1024, 1024
          %125 = vsyncadd [#allocation6], %s124
          %s126 = sshll.u32 [#allocation5], 4
          %s127 = int_to_ptr.vmem [resolvable:$true] %s126
          %132 = dma.hbm_to_vmem [thread:$0]  %s1, 1024, %s127, [#allocation6], 128, 128, 8
        $region16: #{tpu_custom_call.1} parent=11 // pred_fallthru
          _
        // Predicated region
        $region17: #{tpu_custom_call.1} parent=11 // pred_check
          %p133 = pneg %p77
        $region18: #{tpu_custom_call.1} parent=11 // pred_check_branch
          %135 = sbr.rel (%p133) target = $region20
        $region19: #{tpu_custom_call.1} parent=11 // pred_region
          %s137 = ssub.s32 128, 128
          %138 = vsyncadd [#allocation9], %s137
          %s139 = smul.addr %s27, 128
          %s140 = scalar_lea.hbm %s2, %s139
          %s142 = sshll.u32 [#allocation8], 4
          %s143 = int_to_ptr.vmem [resolvable:$true] %s142
          %145 = dma.hbm_to_vmem [thread:$0]  %s140, 128, %s143, [#allocation9]
        $region20: #{tpu_custom_call.1} parent=11 // pred_fallthru
          _
      $region12: #{tpu_custom_call.1} parent=5 // pred_fallthru
        _
      %p146 = scmp.lt.s32.totalorder %s18, 2
      // Predicated region
      $region21: #{tpu_custom_call.1} parent=5 // pred_check
        %p147 = pneg %p146
      $region22: #{tpu_custom_call.1} parent=5 // pred_check_branch
        %149 = sbr.rel (%p147) target = $region24
      $region23: #{tpu_custom_call.1} parent=5 // pred_region
        _
      $region24: #{tpu_custom_call.1} parent=5 // pred_fallthru
        _
      %p150 = scmp.le.s32.totalorder 1, %s18
      %p151 = scmp.lt.s32.totalorder %s18, 3
      %p152 = pnand %p150, %p151
      %p153 = pneg %p152
      // Predicated region
      $region25: #{tpu_custom_call.1} parent=5 // pred_check
        _
      $region26: #{tpu_custom_call.1} parent=5 // pred_check_branch
        %155 = sbr.rel (%p152) target = $region28
      $region27: #{tpu_custom_call.1} parent=5 // pred_region
        %s156 = ssub.s32 %s18, 1
        // Predicated region
        $region29: #{tpu_custom_call.1} parent=27 // pred_check
          %p157 = pneg %p51
        $region30: #{tpu_custom_call.1} parent=27 // pred_check_branch
          %159 = sbr.rel (%p157) target = $region32
        $region31: #{tpu_custom_call.1} parent=27 // pred_region
          %160 = dma.done [#allocation6], 1024
        $region32: #{tpu_custom_call.1} parent=27 // pred_fallthru
          _
        // Predicated region
        $region33: #{tpu_custom_call.1} parent=27 // pred_check
          %p161 = pneg %p77
        $region34: #{tpu_custom_call.1} parent=27 // pred_check_branch
          %163 = sbr.rel (%p161) target = $region36
        $region35: #{tpu_custom_call.1} parent=27 // pred_region
          %164 = dma.done [#allocation9], 128
        $region36: #{tpu_custom_call.1} parent=27 // pred_fallthru
          _
        %p165 = pneg %p51
        %p166 = pneg %p48
        %p167 = pneg %p77
        %p168 = pneg %p74
        %p169 = pneg %p105
        %p170 = pneg %p102
        %s171 = sand.u32 %s92, 1
        %s172 = scalar_lea.sflag [#allocation7], %s171
        %s173 = sand.u32 %s92, 1
        %s174 = smul.addr %s173, 8
        %s175 = scalar_lea.vmem [#allocation10], %s174
        %s176 = smul.u32 %s28, 8
        %s177 = smul.u32 %s27, 8
        %s178 = sadd.s32 %s176, %s177
        %s179 = sld [smem:[#allocation4 + %s178]]
        %s180 = scalar_lea.vmem [#allocation5], %s179
        %v181 = vld [vmem:[%s180] sm:$0x1]
        %182 = vst [vmem:[#allocation2] sm:$0x1] %v181
        %s183 = sadd.s32 %s178, 1
        %s184 = sld [smem:[#allocation4 + %s183]]
        %s185 = scalar_lea.vmem [#allocation5], %s184
        %v186 = vld [vmem:[%s185] sm:$0x1]
        %187 = vst [vmem:[#allocation2 + $0x1] sm:$0x1] %v186
        %s188 = sadd.s32 %s178, 2
        %s189 = sld [smem:[#allocation4 + %s188]]
        %s190 = scalar_lea.vmem [#allocation5], %s189
        %v191 = vld [vmem:[%s190] sm:$0x1]
        %192 = vst [vmem:[#allocation2 + $0x2] sm:$0x1] %v191
        %s193 = sadd.s32 %s178, 3
        %s194 = sld [smem:[#allocation4 + %s193]]
        %s195 = scalar_lea.vmem [#allocation5], %s194
        %v196 = vld [vmem:[%s195] sm:$0x1]
        %197 = vst [vmem:[#allocation2 + $0x3] sm:$0x1] %v196
        %s198 = sadd.s32 %s178, 4
        %s199 = sld [smem:[#allocation4 + %s198]]
        %s200 = scalar_lea.vmem [#allocation5], %s199
        %v201 = vld [vmem:[%s200] sm:$0x1]
        %202 = vst [vmem:[#allocation2 + $0x4] sm:$0x1] %v201
        %s203 = sadd.s32 %s178, 5
        %s204 = sld [smem:[#allocation4 + %s203]]
        %s205 = scalar_lea.vmem [#allocation5], %s204
        %v206 = vld [vmem:[%s205] sm:$0x1]
        %207 = vst [vmem:[#allocation2 + $0x5] sm:$0x1] %v206
        %s208 = sadd.s32 %s178, 6
        %s209 = sld [smem:[#allocation4 + %s208]]
        %s210 = scalar_lea.vmem [#allocation5], %s209
        %v211 = vld [vmem:[%s210] sm:$0x1]
        %212 = vst [vmem:[#allocation2 + $0x6] sm:$0x1] %v211
        %s213 = sadd.s32 %s178, 7
        %s214 = sld [smem:[#allocation4 + %s213]]
        %s215 = scalar_lea.vmem [#allocation5], %s214
        %v216 = vld [vmem:[%s215] sm:$0x1]
        %217 = vst [vmem:[#allocation2 + $0x7] sm:$0x1] %v216
        %v218 = vld [vmem:[#allocation2] sm:$0xff]
        %v219 = vld [vmem:[#allocation8] sm:$0xff]
        %v220 = vadd.f32 %v218, %v219
        %221 = vst [vmem:[%s175] sm:$0xff] %v220
        %s222 = sand.u32 %s92, 1
        %s223 = scalar_lea.sflag [#allocation7], %s222
        %s224 = sand.u32 %s92, 1
        %s225 = smul.addr %s224, 8
        %s226 = scalar_lea.vmem [#allocation10], %s225
        // Predicated region
        $region37: #{tpu_custom_call.1} parent=27 // pred_check
          %p227 = pneg %p102
        $region38: #{tpu_custom_call.1} parent=27 // pred_check_branch
          %229 = sbr.rel (%p227) target = $region40
        $region39: #{tpu_custom_call.1} parent=27 // pred_region
          %s231 = ssub.s32 128, 128
          %232 = vsyncadd %s223, %s231
          %s233 = sadd.s32 %s27, %s28
          %s234 = smul.addr %s233, 128
          %s235 = scalar_lea.hbm %s3, %s234
          %s237 = sshll.u32 %s226, 4
          %s238 = int_to_ptr.vmem [resolvable:$true] %s237
          %240 = dma.vmem_to_hbm [thread:$0]  %s238, 128, %s235, %s223
        $region40: #{tpu_custom_call.1} parent=27 // pred_fallthru
          _
      $region28: #{tpu_custom_call.1} parent=5 // pred_fallthru
        _
      %p241 = scmp.le.s32.totalorder 2, %s18
      // Predicated region
      $region41: #{tpu_custom_call.1} parent=5 // pred_check
        %p242 = pneg %p241
      $region42: #{tpu_custom_call.1} parent=5 // pred_check_branch
        %244 = sbr.rel (%p242) target = $region44
      $region43: #{tpu_custom_call.1} parent=5 // pred_region
        %s245 = ssub.s32 %s18, 2
        // Predicated region
        $region45: #{tpu_custom_call.1} parent=43 // pred_check
          %p246 = pneg %p108
        $region46: #{tpu_custom_call.1} parent=43 // pred_check_branch
          %248 = sbr.rel (%p246) target = $region48
        $region47: #{tpu_custom_call.1} parent=43 // pred_region
          %s249 = sand.u32 %s93, 1
          %s250 = scalar_lea.sflag [#allocation7], %s249
          %s251 = sand.u32 %s93, 1
          %s252 = smul.addr %s251, 8
          %s253 = scalar_lea.vmem [#allocation10], %s252
          %254 = dma.done %s250, 128
        $region48: #{tpu_custom_call.1} parent=43 // pred_fallthru
          _
      $region44: #{tpu_custom_call.1} parent=5 // pred_fallthru
        _
    $region6: #{tpu_custom_call.1} parent=1 // loop_footer
      %s22 = sadd.s32 1, %s18
    $region7: #{tpu_custom_call.1} parent=1 // loop_footer_branch
      %17 = sbr.rel target = $region3
    $region8: #{tpu_custom_call.1} parent=1 // loop_exit
      _
    %255 = vsyncpa [#allocation6], 1
    %s256 = scalar_lea.sflag [#allocation6], 1
    %257 = vsyncpa %s256, 1
    %258 = vsyncpa [#allocation9], 1
    %259 = vsyncpa [#allocation7], 1
    %s260 = scalar_lea.sflag [#allocation7], 1
    %261 = vsyncpa %s260, 1

</llo_original>
